<compile_context>
chip_gen: v7x
topology: tpu7x:2x2x1
jax: 0.10.0
libtpu: 0.0.40
codegen_flags: <defaults>
</compile_context>

<pallas_src>
import jax
import jax.numpy as jnp
from jax import lax
from jax.experimental import pallas as pl
from jax.experimental.pallas import tpu as pltpu


# ---------------------------------------------------------------------------
# In-kernel helpers
# ---------------------------------------------------------------------------
def _gelu_erf(x):
    # PyTorch nn.GELU() default: exact erf formulation.
    return 0.5 * x * (1.0 + lax.erf(x * 0.7071067811865476))


def _gelu_tanh(x):
    # tanh approximation (EUP path); deviates from exact GELU by ~1e-3.
    c = 0.7978845608028654  # sqrt(2/pi)
    return 0.5 * x * (1.0 + jnp.tanh(c * (x + 0.044715 * x * x * x)))


def _ln_stats(x, avg_ref, eps=1e-5):
    """Normalization part of LayerNorm on a lane-packed (rows, P*D) tile.

    avg_ref is block-diagonal with (1/D) blocks, so x @ avg broadcasts the
    per-logical-row mean across its lane block (segmented mean on the MXU).
    The LN affine (weight/bias) is folded into the following Linear host-side.
    """
    a = avg_ref[...]
    mean = jnp.dot(x.astype(a.dtype), a, preferred_element_type=jnp.float32)
    xc = x - mean
    var = jnp.dot((xc * xc).astype(a.dtype), a,
                  preferred_element_type=jnp.float32)
    return xc * lax.rsqrt(var + eps)


# ---------------------------------------------------------------------------
# Pallas kernel: one tile of packed rows, all weights resident in VMEM
# ---------------------------------------------------------------------------
def _make_efd_kernel(share_avg, approx_gelu):
    gelu = _gelu_tanh if approx_gelu else _gelu_erf

    def body(x_ref, avg_in_ref, avg_hid_ref, w1_ref, b1_ref, w2_ref, b2_ref,
             s_ref, c0_ref, c1_ref, out_ref):
        x = x_ref[...]                                       # (tile, P*D_in)

        h = _ln_stats(x, avg_in_ref)
        h = jnp.dot(h.astype(w1_ref.dtype), w1_ref[...],
                    preferred_element_type=jnp.float32) + b1_ref[...]
        h = gelu(h)
        h = _ln_stats(h, avg_hid_ref)
        y = jnp.dot(h.astype(w2_ref.dtype), w2_ref[...],
                    preferred_element_type=jnp.float32) + b2_ref[...]

        # normalized_efd_activation collapsed to: out = c0 + c1 * tanh(s * y)
        #   coeff 0 of harmonic 0 : c0=1,    c1=0           -> 1
        #   coeff 1,2 of harm. 0  : c0=0,    c1=0           -> 0
        #   coeff 3 of harmonic 0 : c0=-0.5, c1=-0.5, s=0.5 -> -sigmoid(y)
        #   harmonics 1..          : c0=0,    c1=1,   s=1   -> tanh(y)
        t = jnp.tanh(y * s_ref[...])
        # TODO(synk): normalize_efd not provided -> identity.
        out_ref[...] = c0_ref[...] + c1_ref[...] * t

    if share_avg:
        def kernel(x_ref, avg_ref, w1_ref, b1_ref, w2_ref, b2_ref,
                   s_ref, c0_ref, c1_ref, out_ref):
            body(x_ref, avg_ref, avg_ref, w1_ref, b1_ref, w2_ref, b2_ref,
                 s_ref, c0_ref, c1_ref, out_ref)
        return kernel

    def kernel(x_ref, avg_in_ref, avg_hid_ref, w1_ref, b1_ref, w2_ref, b2_ref,
               s_ref, c0_ref, c1_ref, out_ref):
        body(x_ref, avg_in_ref, avg_hid_ref, w1_ref, b1_ref, w2_ref, b2_ref,
             s_ref, c0_ref, c1_ref, out_ref)
    return kernel


# ---------------------------------------------------------------------------
# Wrapper
# ---------------------------------------------------------------------------
def _round_up(a, m):
    return ((a + m - 1) // m) * m


def efd_module_direct(hidden_state, params, order, *, pack=None,
                      tile_packed_rows=512, approx_gelu=False,
                      bf16_matmul=False):
    """hidden_state: (B, O, D_in) f32 -> efd: (B, O, order, 4) f32."""
    B, O, d_in = hidden_state.shape
    d_hid = params["w1"].shape[1]
    d_out = order * 4
    assert params["w1"].shape[0] == d_in
    assert params["w2"].shape == (d_hid, d_out)

    # Pack P logical rows per lane-dense row (4 for 32-wide features -> 128
    # lanes: lane-dense loads/stores, 128-wide MXU K/N).
    if pack is None:
        pack = max(1, 128 // max(d_in, d_hid, d_out))
    P = pack
    M = B * O

    # Pad only to a multiple of P (<= P-1 zero rows); Pallas handles a partial
    # last grid block, so no full-tile-grid input copy in HBM.
    m_pad = _round_up(max(M, 1), P)
    mp = m_pad // P

    # Multiple of 8; keep >= 4 grid steps for large inputs so each v7x
    # TensorCore gets >= 2 "parallel" steps and DMA overlaps compute.  512
    # packed rows (~256 KiB/buffer) stays far under v5e's 16 MiB scoped VMEM.
    tile = max(8, min(tile_packed_rows, _round_up(pl.cdiv(mp, 4), 8)))
    grid = pl.cdiv(mp, tile)

    x2d = hidden_state.reshape(M, d_in).astype(jnp.float32)
    if m_pad != M:
        x2d = jnp.pad(x2d, ((0, m_pad - M), (0, 0)))
    x_packed = x2d.reshape(mp, P * d_in)

    # ---- Fold LayerNorm affines into the Linear layers (host side) --------
    ln1_w = params["ln1_w"].reshape(d_in).astype(jnp.float32)
    ln1_b = params["ln1_b"].reshape(d_in).astype(jnp.float32)
    ln2_w = params["ln2_w"].reshape(d_hid).astype(jnp.float32)
    ln2_b = params["ln2_b"].reshape(d_hid).astype(jnp.float32)
    w1 = params["w1"].astype(jnp.float32)
    w2 = params["w2"].astype(jnp.float32)
    b1 = params["b1"].reshape(d_hid).astype(jnp.float32)
    b2 = params["b2"].reshape(d_out).astype(jnp.float32)

    w1f = ln1_w[:, None] * w1
    b1f = ln1_b @ w1 + b1
    w2f = ln2_w[:, None] * w2
    b2f = ln2_b @ w2 + b2

    # ---- Block-diagonal weights / segmented-averaging matrices ------------
    w_dtype = jnp.bfloat16 if bf16_matmul else jnp.float32
    eye_p = jnp.eye(P, dtype=jnp.float32)
    w1_blk = jnp.kron(eye_p, w1f).astype(w_dtype)
    w2_blk = jnp.kron(eye_p, w2f).astype(w_dtype)
    avg_in = jnp.kron(
        eye_p, jnp.full((d_in, d_in), 1.0 / d_in, jnp.float32)).astype(w_dtype)
    share_avg = (d_in == d_hid)
    avg_hid = None if share_avg else jnp.kron(
        eye_p, jnp.full((d_hid, d_hid), 1.0 / d_hid, jnp.float32)).astype(w_dtype)

    b1t = jnp.tile(b1f.reshape(1, d_hid), (1, P))
    b2t = jnp.tile(b2f.reshape(1, d_out), (1, P))

    # ---- Activation-epilogue constant vectors ------------------------------
    local = jnp.arange(P * d_out, dtype=jnp.int32) % d_out
    coeff = local % 4
    is_h0 = local < 4
    sig_col = jnp.logical_and(is_h0, coeff == 3)
    s_vec = jnp.where(sig_col, 0.5, 1.0).astype(jnp.float32).reshape(1, -1)
    c1_vec = jnp.where(is_h0, jnp.where(coeff == 3, -0.5, 0.0),
                       1.0).astype(jnp.float32).reshape(1, -1)
    c0_vec = jnp.where(sig_col, -0.5,
                       jnp.where(jnp.logical_and(is_h0, coeff == 0), 1.0, 0.0)
                       ).astype(jnp.float32).reshape(1, -1)

    # ---- BlockSpecs ---------------------------------------------------------
    row_in = pl.BlockSpec((tile, P * d_in), lambda i: (i, 0))
    row_out = pl.BlockSpec((tile, P * d_out), lambda i: (i, 0))

    def const_spec(shape):
        return pl.BlockSpec(shape, lambda i: (0, 0))

    in_arrays = [x_packed, avg_in]
    in_specs = [row_in, const_spec((P * d_in, P * d_in))]
    if not share_avg:
        in_arrays.append(avg_hid)
        in_specs.append(const_spec((P * d_hid, P * d_hid)))
    in_arrays += [w1_blk, b1t, w2_blk, b2t, s_vec, c0_vec, c1_vec]
    in_specs += [
        const_spec((P * d_in, P * d_hid)),   # W1' block-diagonal
        const_spec((1, P * d_hid)),          # b1'
        const_spec((P * d_hid, P * d_out)),  # W2' block-diagonal
        const_spec((1, P * d_out)),          # b2'
        const_spec((1, P * d_out)),          # s
        const_spec((1, P * d_out)),          # c0
        const_spec((1, P * d_out)),          # c1
    ]

    out_packed = pl.pallas_call(
        _make_efd_kernel(share_avg, approx_gelu),
        out_shape=jax.ShapeDtypeStruct((mp, P * d_out), jnp.float32),
        grid_spec=pltpu.PrefetchScalarGridSpec(
            num_scalar_prefetch=0,
            grid=(grid,),
            in_specs=in_specs,
            out_specs=row_out,
        ),
        compiler_params=pltpu.CompilerParams(
            dimension_semantics=("parallel",)),
    )(*in_arrays)

    return out_packed.reshape(m_pad, d_out)[:M].reshape(B, O, order, 4)


# ---------------------------------------------------------------------------
# Pure-JAX reference (standard, un-packed math; HIGHEST-precision matmuls)
# ---------------------------------------------------------------------------
def _layernorm_ref(x, w, b, eps=1e-5):
    mean = jnp.mean(x, axis=-1, keepdims=True)
    var = jnp.mean((x - mean) ** 2, axis=-1, keepdims=True)
    return (x - mean) * lax.rsqrt(var + eps) * w + b


def efd_module_direct_ref(hidden_state, params, order):
    hp = lax.Precision.HIGHEST
    x = hidden_state
    h = _layernorm_ref(x, params["ln1_w"][0], params["ln1_b"][0])
    h = jnp.dot(h, params["w1"], precision=hp) + params["b1"][0]
    h = _gelu_erf(h)
    h = _layernorm_ref(h, params["ln2_w"][0], params["ln2_b"][0])
    y = jnp.dot(h, params["w2"], precision=hp) + params["b2"][0]
    B, O, _ = y.shape
    efd = y.reshape(B, O, order, 4)
    h0 = jnp.stack(
        [jnp.ones_like(efd[..., 0, 0]),
         jnp.zeros_like(efd[..., 0, 1]),
         jnp.zeros_like(efd[..., 0, 2]),
         -jax.nn.sigmoid(efd[..., 0, 3])], axis=-1)
    rest = jnp.tanh(efd[..., 1:, :])
    return jnp.concatenate([h0[..., None, :], rest], axis=-2)


# ---------------------------------------------------------------------------
# Deterministic parameter construction (synthetic, no checkpoint)
# ---------------------------------------------------------------------------
def make_params(key, input_dim, hidden_dim, order):
    out_dim = order * 4
    k1, k2, k3, k4, k5, k6, k7, k8 = jax.random.split(key, 8)
    return {
        "ln1_w": 1.0 + 0.1 * jax.random.normal(k5, (1, input_dim), jnp.float32),
        "ln1_b": 0.01 * jax.random.normal(k6, (1, input_dim), jnp.float32),
        "w1": (jax.random.normal(k1, (input_dim, hidden_dim), jnp.float32)
               / jnp.sqrt(jnp.float32(input_dim))),
        "b1": 0.01 * jax.random.normal(k2, (1, hidden_dim), jnp.float32),
        "ln2_w": 1.0 + 0.1 * jax.random.normal(k7, (1, hidden_dim), jnp.float32),
        "ln2_b": 0.01 * jax.random.normal(k8, (1, hidden_dim), jnp.float32),
        "w2": (jax.random.normal(k3, (hidden_dim, out_dim), jnp.float32)
               / jnp.sqrt(jnp.float32(hidden_dim))),
        "b2": 0.01 * jax.random.normal(k4, (1, out_dim), jnp.float32),
    }


if __name__ == "__main__":
    # EfdModuleConfig(order=8, mode=Direct, input_dim=32, hidden_dim=32,
    #                 num_layers=2)
    ORDER, D_IN, D_HID = 8, 32, 32

    key = jax.random.PRNGKey(0)
    k_x, k_p, k_x2 = jax.random.split(key, 3)
    params = make_params(k_p, D_IN, D_HID, ORDER)

    # Small shape from the module spec (batch_dim=2, object_dim=4).
    B, O = 2, 4
    hidden_state = jax.random.normal(k_x, (B, O, D_IN), jnp.float32)
    ref = jax.block_until_ready(efd_module_direct_ref(hidden_state, params, ORDER))

    # Default path: f32 everywhere, exact-erf GELU (module contract).
    efd = jax.block_until_ready(efd_module_direct(hidden_state, params, ORDER))
    assert efd.shape == (B, O, ORDER, 4)
    assert jnp.allclose(efd, ref, atol=5e-4, rtol=5e-4), "mismatch (f32 exact)"

    # Shape exercising row padding (M % P != 0), a multi-step "parallel" grid
    # and a partial last grid block.
    B2, O2 = 3, 137
    hidden_state2 = jax.random.normal(k_x2, (B2, O2, D_IN), jnp.float32)
    ref2 = jax.block_until_ready(efd_module_direct_ref(hidden_state2, params, ORDER))
    efd2 = jax.block_until_ready(efd_module_direct(hidden_state2, params, ORDER))
    assert efd2.shape == (B2, O2, ORDER, 4)
    assert jnp.allclose(efd2, ref2, atol=5e-4, rtol=5e-4), "mismatch (tiled)"

    # Perf-flag variants (checked against the exact-GELU f32 reference with
    # tolerances matching their documented numeric deviation).
    efd3 = jax.block_until_ready(
        efd_module_direct(hidden_state2, params, ORDER, approx_gelu=True))
    assert jnp.allclose(efd3, ref2, atol=5e-3, rtol=5e-3), "mismatch (tanh-gelu)"

    efd4 = jax.block_until_ready(
        efd_module_direct(hidden_state2, params, ORDER, bf16_matmul=True))
    assert jnp.all(jnp.isfinite(efd4))
    assert jnp.allclose(efd4, ref2, atol=5e-2, rtol=5e-2), "mismatch (bf16 mm)"

    print("KERNEL_OK")
</pallas_src>

<mosaic_0001>
module attributes {stable_mosaic.version = 11 : i64} {
  func.func @kernel(%arg0: i32, %arg1: memref<8x128xf32, #tpu.memory_space<vmem>>, %arg2: memref<128x128xf32, #tpu.memory_space<vmem>>, %arg3: memref<128x128xf32, #tpu.memory_space<vmem>>, %arg4: memref<1x128xf32, #tpu.memory_space<vmem>>, %arg5: memref<128x128xf32, #tpu.memory_space<vmem>>, %arg6: memref<1x128xf32, #tpu.memory_space<vmem>>, %arg7: memref<1x128xf32, #tpu.memory_space<vmem>>, %arg8: memref<1x128xf32, #tpu.memory_space<vmem>>, %arg9: memref<1x128xf32, #tpu.memory_space<vmem>>, %arg10: memref<8x128xf32, #tpu.memory_space<vmem>>) attributes {dimension_semantics = [#tpu.dimension_semantics<parallel>], iteration_bounds = array<i64: 1>, scalar_prefetch = 0 : i64, scratch_operands = 0 : i64, tpu.core_type = #tpu.core_type<tc>, window_params = [{transform_indices = @transform_0, window_bounds = array<i64: 8, 128>}, {pipeline_mode = #tpu.pipeline_mode<synchronous>, transform_indices = @transform_1, window_bounds = array<i64: 128, 128>}, {pipeline_mode = #tpu.pipeline_mode<synchronous>, transform_indices = @transform_2, window_bounds = array<i64: 128, 128>}, {pipeline_mode = #tpu.pipeline_mode<synchronous>, transform_indices = @transform_3, window_bounds = array<i64: 1, 128>}, {pipeline_mode = #tpu.pipeline_mode<synchronous>, transform_indices = @transform_4, window_bounds = array<i64: 128, 128>}, {pipeline_mode = #tpu.pipeline_mode<synchronous>, transform_indices = @transform_5, window_bounds = array<i64: 1, 128>}, {pipeline_mode = #tpu.pipeline_mode<synchronous>, transform_indices = @transform_6, window_bounds = array<i64: 1, 128>}, {pipeline_mode = #tpu.pipeline_mode<synchronous>, transform_indices = @transform_7, window_bounds = array<i64: 1, 128>}, {pipeline_mode = #tpu.pipeline_mode<synchronous>, transform_indices = @transform_8, window_bounds = array<i64: 1, 128>}, {transform_indices = @transform_9, window_bounds = array<i64: 8, 128>}]} {
    %c0 = arith.constant 0 : index
    %c0_0 = arith.constant 0 : index
    %0 = vector.load %arg1[%c0, %c0_0] : memref<8x128xf32, #tpu.memory_space<vmem>>, vector<8x128xf32>
    %c0_1 = arith.constant 0 : index
    %c0_2 = arith.constant 0 : index
    %1 = vector.load %arg2[%c0_1, %c0_2] : memref<128x128xf32, #tpu.memory_space<vmem>>, vector<128x128xf32>
    %cst = arith.constant dense<0.000000e+00> : vector<8x128xf32>
    %2 = tpu.matmul %0, %1, %cst {dimension_numbers = #tpu.dot_dimension_numbers<[1], [0], [0], [1], [0, 0, 1, 1], [], []>} : vector<8x128xf32>, vector<128x128xf32>, vector<8x128xf32> -> vector<8x128xf32>
    %3 = arith.subf %0, %2 : vector<8x128xf32>
    %4 = arith.mulf %3, %3 : vector<8x128xf32>
    %cst_3 = arith.constant dense<0.000000e+00> : vector<8x128xf32>
    %5 = tpu.matmul %4, %1, %cst_3 {dimension_numbers = #tpu.dot_dimension_numbers<[1], [0], [0], [1], [0, 0, 1, 1], [], []>} : vector<8x128xf32>, vector<128x128xf32>, vector<8x128xf32> -> vector<8x128xf32>
    %cst_4 = arith.constant 9.99999974E-6 : f32
    %6 = vector.broadcast %cst_4 : f32 to vector<8x128xf32>
    %7 = arith.addf %5, %6 : vector<8x128xf32>
    %8 = math.rsqrt %7 : vector<8x128xf32>
    %9 = arith.mulf %3, %8 : vector<8x128xf32>
    %c0_5 = arith.constant 0 : index
    %c0_6 = arith.constant 0 : index
    %10 = vector.load %arg3[%c0_5, %c0_6] : memref<128x128xf32, #tpu.memory_space<vmem>>, vector<128x128xf32>
    %cst_7 = arith.constant dense<0.000000e+00> : vector<8x128xf32>
    %11 = tpu.matmul %9, %10, %cst_7 {dimension_numbers = #tpu.dot_dimension_numbers<[1], [0], [0], [1], [0, 0, 1, 1], [], []>} : vector<8x128xf32>, vector<128x128xf32>, vector<8x128xf32> -> vector<8x128xf32>
    %c0_8 = arith.constant 0 : index
    %c0_9 = arith.constant 0 : index
    %12 = vector.load %arg4[%c0_8, %c0_9] : memref<1x128xf32, #tpu.memory_space<vmem>>, vector<1x128xf32>
    %13 = vector.broadcast %12 : vector<1x128xf32> to vector<8x128xf32>
    %14 = arith.addf %11, %13 : vector<8x128xf32>
    %cst_10 = arith.constant 5.000000e-01 : f32
    %15 = vector.broadcast %cst_10 : f32 to vector<8x128xf32>
    %16 = arith.mulf %15, %14 : vector<8x128xf32>
    %cst_11 = arith.constant 0.707106769 : f32
    %17 = vector.broadcast %cst_11 : f32 to vector<8x128xf32>
    %18 = arith.mulf %14, %17 : vector<8x128xf32>
    %19 = math.erf %18 : vector<8x128xf32>
    %cst_12 = arith.constant 1.000000e+00 : f32
    %20 = vector.broadcast %cst_12 : f32 to vector<8x128xf32>
    %21 = arith.addf %20, %19 : vector<8x128xf32>
    %22 = arith.mulf %16, %21 : vector<8x128xf32>
    %c0_13 = arith.constant 0 : index
    %c0_14 = arith.constant 0 : index
    %23 = vector.load %arg2[%c0_13, %c0_14] : memref<128x128xf32, #tpu.memory_space<vmem>>, vector<128x128xf32>
    %cst_15 = arith.constant dense<0.000000e+00> : vector<8x128xf32>
    %24 = tpu.matmul %22, %23, %cst_15 {dimension_numbers = #tpu.dot_dimension_numbers<[1], [0], [0], [1], [0, 0, 1, 1], [], []>} : vector<8x128xf32>, vector<128x128xf32>, vector<8x128xf32> -> vector<8x128xf32>
    %25 = arith.subf %22, %24 : vector<8x128xf32>
    %26 = arith.mulf %25, %25 : vector<8x128xf32>
    %cst_16 = arith.constant dense<0.000000e+00> : vector<8x128xf32>
    %27 = tpu.matmul %26, %23, %cst_16 {dimension_numbers = #tpu.dot_dimension_numbers<[1], [0], [0], [1], [0, 0, 1, 1], [], []>} : vector<8x128xf32>, vector<128x128xf32>, vector<8x128xf32> -> vector<8x128xf32>
    %cst_17 = arith.constant 9.99999974E-6 : f32
    %28 = vector.broadcast %cst_17 : f32 to vector<8x128xf32>
    %29 = arith.addf %27, %28 : vector<8x128xf32>
    %30 = math.rsqrt %29 : vector<8x128xf32>
    %31 = arith.mulf %25, %30 : vector<8x128xf32>
    %c0_18 = arith.constant 0 : index
    %c0_19 = arith.constant 0 : index
    %32 = vector.load %arg5[%c0_18, %c0_19] : memref<128x128xf32, #tpu.memory_space<vmem>>, vector<128x128xf32>
    %cst_20 = arith.constant dense<0.000000e+00> : vector<8x128xf32>
    %33 = tpu.matmul %31, %32, %cst_20 {dimension_numbers = #tpu.dot_dimension_numbers<[1], [0], [0], [1], [0, 0, 1, 1], [], []>} : vector<8x128xf32>, vector<128x128xf32>, vector<8x128xf32> -> vector<8x128xf32>
    %c0_21 = arith.constant 0 : index
    %c0_22 = arith.constant 0 : index
    %34 = vector.load %arg6[%c0_21, %c0_22] : memref<1x128xf32, #tpu.memory_space<vmem>>, vector<1x128xf32>
    %35 = vector.broadcast %34 : vector<1x128xf32> to vector<8x128xf32>
    %36 = arith.addf %33, %35 : vector<8x128xf32>
    %c0_23 = arith.constant 0 : index
    %c0_24 = arith.constant 0 : index
    %37 = vector.load %arg7[%c0_23, %c0_24] : memref<1x128xf32, #tpu.memory_space<vmem>>, vector<1x128xf32>
    %38 = vector.broadcast %37 : vector<1x128xf32> to vector<8x128xf32>
    %39 = arith.mulf %36, %38 : vector<8x128xf32>
    %40 = math.tanh %39 : vector<8x128xf32>
    %c0_25 = arith.constant 0 : index
    %c0_26 = arith.constant 0 : index
    %41 = vector.load %arg8[%c0_25, %c0_26] : memref<1x128xf32, #tpu.memory_space<vmem>>, vector<1x128xf32>
    %c0_27 = arith.constant 0 : index
    %c0_28 = arith.constant 0 : index
    %42 = vector.load %arg9[%c0_27, %c0_28] : memref<1x128xf32, #tpu.memory_space<vmem>>, vector<1x128xf32>
    %43 = vector.broadcast %42 : vector<1x128xf32> to vector<8x128xf32>
    %44 = arith.mulf %43, %40 : vector<8x128xf32>
    %45 = vector.broadcast %41 : vector<1x128xf32> to vector<8x128xf32>
    %46 = arith.addf %45, %44 : vector<8x128xf32>
    %c0_29 = arith.constant 0 : index
    %c0_30 = arith.constant 0 : index
    %47 = vector.load %arg10[%c0_29, %c0_30] : memref<8x128xf32, #tpu.memory_space<vmem>>, vector<8x128xf32>
    tpu.vector_store %arg10[%c0_29, %c0_30], %46 {strides = array<i32>} : memref<8x128xf32, #tpu.memory_space<vmem>>, vector<8x128xf32>,
    return
  }
  func.func @transform_0(%arg0: i32) -> (i32, i32) {
    %c0_i32 = arith.constant 0 : i32
    %c0_i32_0 = arith.constant 0 : i32
    return %arg0, %c0_i32 : i32, i32
  }
  func.func @transform_1(%arg0: i32) -> (i32, i32) {
    %c0_i32 = arith.constant 0 : i32
    %c0_i32_0 = arith.constant 0 : i32
    %c0_i32_1 = arith.constant 0 : i32
    return %c0_i32, %c0_i32_0 : i32, i32
  }
  func.func @transform_2(%arg0: i32) -> (i32, i32) {
    %c0_i32 = arith.constant 0 : i32
    %c0_i32_0 = arith.constant 0 : i32
    %c0_i32_1 = arith.constant 0 : i32
    return %c0_i32, %c0_i32_0 : i32, i32
  }
  func.func @transform_3(%arg0: i32) -> (i32, i32) {
    %c0_i32 = arith.constant 0 : i32
    %c0_i32_0 = arith.constant 0 : i32
    %c0_i32_1 = arith.constant 0 : i32
    return %c0_i32, %c0_i32_0 : i32, i32
  }
  func.func @transform_4(%arg0: i32) -> (i32, i32) {
    %c0_i32 = arith.constant 0 : i32
    %c0_i32_0 = arith.constant 0 : i32
    %c0_i32_1 = arith.constant 0 : i32
    return %c0_i32, %c0_i32_0 : i32, i32
  }
  func.func @transform_5(%arg0: i32) -> (i32, i32) {
    %c0_i32 = arith.constant 0 : i32
    %c0_i32_0 = arith.constant 0 : i32
    %c0_i32_1 = arith.constant 0 : i32
    return %c0_i32, %c0_i32_0 : i32, i32
  }
  func.func @transform_6(%arg0: i32) -> (i32, i32) {
    %c0_i32 = arith.constant 0 : i32
    %c0_i32_0 = arith.constant 0 : i32
    %c0_i32_1 = arith.constant 0 : i32
    return %c0_i32, %c0_i32_0 : i32, i32
  }
  func.func @transform_7(%arg0: i32) -> (i32, i32) {
    %c0_i32 = arith.constant 0 : i32
    %c0_i32_0 = arith.constant 0 : i32
    %c0_i32_1 = arith.constant 0 : i32
    return %c0_i32, %c0_i32_0 : i32, i32
  }
  func.func @transform_8(%arg0: i32) -> (i32, i32) {
    %c0_i32 = arith.constant 0 : i32
    %c0_i32_0 = arith.constant 0 : i32
    %c0_i32_1 = arith.constant 0 : i32
    return %c0_i32, %c0_i32_0 : i32, i32
  }
  func.func @transform_9(%arg0: i32) -> (i32, i32) {
    %c0_i32 = arith.constant 0 : i32
    %c0_i32_0 = arith.constant 0 : i32
    return %arg0, %c0_i32 : i32, i32
  }
}

</mosaic_0001>

<llo_original>
// kernel: tpu_custom_call.1
$region0: #{tpu_custom_call.1}
  #allocation0 [shape = 'u32[]', space=smem, size = 0x4, offset = 0x4, fixed_abs, tag = 'smem constant byte address 0x4 - core index']
  #allocation1 [shape = 'u32[144,128]{1,0:T(1,128)}', space=vmem, size = 0x12000, scoped, tag = 'internal scratch']
  %s0 = inlined_call_operand.hbm [shape: f32[2,128], index: 0, kind: input, shape index: {}]
  %s1 = inlined_call_operand.hbm [shape: f32[128,128], index: 1, kind: input, shape index: {}]
  %s2 = inlined_call_operand.hbm [shape: f32[128,128], index: 2, kind: input, shape index: {}]
  %s3 = inlined_call_operand.vmem [shape: f32[1,128], index: 3, kind: input, shape index: {}]
  %s4 = inlined_call_operand.hbm [shape: f32[128,128], index: 4, kind: input, shape index: {}]
  %s5 = inlined_call_operand.vmem [shape: f32[1,128], index: 5, kind: input, shape index: {}]
  %s6 = inlined_call_operand.vmem [shape: f32[1,128], index: 6, kind: input, shape index: {}]
  %s7 = inlined_call_operand.vmem [shape: f32[1,128], index: 7, kind: input, shape index: {}]
  %s8 = inlined_call_operand.vmem [shape: f32[1,128], index: 8, kind: input, shape index: {}]
  %s9 = inlined_call_operand.hbm [shape: f32[2,128], index: 9, kind: output, shape index: {}]
  %s10 = sld [smem:[#allocation0]]
  $region62: #{tpu_custom_call.1} parent=0
    _
  %s12 = ssub.s32 1, %s10
  %s13 = scalar_select 0, %s12, %s10
  $region1: #{tpu_custom_call.1} parent=0
    #allocation2 [shape = 'u8[4096]{0}', space=vmem, size = 0x1000, scoped, tag = 'input window, operand 0, single buffered']
    #allocation3 [shape = 's32[1]{0}', space=sflag, size = 0x4, scoped, tag = 'scoped memory for tpu_custom_call.1']
    #allocation4 [shape = 's32[1]{0}', space=sflag, size = 0x4, scoped, tag = 'scoped memory for tpu_custom_call.1']
    #allocation5 [shape = 'u8[65536]{0}', space=vmem, size = 0x10000, scoped, tag = 'input window, operand 1, single buffered']
    #allocation6 [shape = 's32[1]{0}', space=sflag, size = 0x4, scoped, tag = 'scoped memory for tpu_custom_call.1']
    #allocation7 [shape = 'u8[65536]{0}', space=vmem, size = 0x10000, scoped, tag = 'input window, operand 2, single buffered']
    #allocation8 [shape = 'u8[65536]{0}', space=vmem, size = 0x10000, scoped, tag = 'input window, operand 4, single buffered']
    #allocation9 [shape = 's32[1]{0}', space=sflag, size = 0x4, scoped, tag = 'scoped memory for tpu_custom_call.1']
    #allocation10 [shape = 'u8[4096]{0}', space=vmem, size = 0x1000, scoped, tag = 'output window, operand 0, single buffered']
    %14 = vsyncpa [#allocation3], 0
    %15 = vsyncpa [#allocation6], 0
    %16 = vsyncpa [#allocation9], 0
    %17 = vsyncpa [#allocation4], 0
    // Predicated region
    $region2: #{tpu_custom_call.1} parent=1 // pred_check
      _
    $region3: #{tpu_custom_call.1} parent=1 // pred_check_branch
      %19 = sbr.rel (0) target = $region5
    $region4: #{tpu_custom_call.1} parent=1 // pred_region
      %s21 = ssub.s32 128, 32
      %22 = vsyncadd [#allocation3], %s21
      %s23 = sshll.u32 [#allocation2], 4
      %s24 = int_to_ptr.vmem [resolvable:$true] %s23
      %29 = dma.hbm_to_vmem [thread:$0]  %s0, 32, %s24, [#allocation3], 32, 32, 2
    $region5: #{tpu_custom_call.1} parent=1 // pred_fallthru
      _
    // Predicated region
    $region6: #{tpu_custom_call.1} parent=1 // pred_check
      _
    $region7: #{tpu_custom_call.1} parent=1 // pred_check_branch
      %31 = sbr.rel (0) target = $region9
    $region8: #{tpu_custom_call.1} parent=1 // pred_region
      %s33 = ssub.s32 2048, 2048
      %34 = vsyncadd [#allocation6], %s33
      %s35 = sshll.u32 [#allocation5], 4
      %s36 = int_to_ptr.vmem [resolvable:$true] %s35
      %41 = dma.hbm_to_vmem [thread:$0]  %s1, 2048, %s36, [#allocation6], 128, 128, 8
    $region9: #{tpu_custom_call.1} parent=1 // pred_fallthru
      _
    // Predicated region
    $region10: #{tpu_custom_call.1} parent=1 // pred_check
      _
    $region11: #{tpu_custom_call.1} parent=1 // pred_check_branch
      %43 = sbr.rel (0) target = $region13
    $region12: #{tpu_custom_call.1} parent=1 // pred_region
      %s45 = ssub.s32 2048, 2048
      %46 = vsyncadd [#allocation6], %s45
      %s47 = sshll.u32 [#allocation7], 4
      %s48 = int_to_ptr.vmem [resolvable:$true] %s47
      %53 = dma.hbm_to_vmem [thread:$0]  %s2, 2048, %s48, [#allocation6], 128, 128, 8
    $region13: #{tpu_custom_call.1} parent=1 // pred_fallthru
      _
    // Predicated region
    $region14: #{tpu_custom_call.1} parent=1 // pred_check
      _
    $region15: #{tpu_custom_call.1} parent=1 // pred_check_branch
      %55 = sbr.rel (0) target = $region17
    $region16: #{tpu_custom_call.1} parent=1 // pred_region
      _
    $region17: #{tpu_custom_call.1} parent=1 // pred_fallthru
      _
    // Predicated region
    $region18: #{tpu_custom_call.1} parent=1 // pred_check
      _
    $region19: #{tpu_custom_call.1} parent=1 // pred_check_branch
      %57 = sbr.rel (0) target = $region21
    $region20: #{tpu_custom_call.1} parent=1 // pred_region
      %s59 = ssub.s32 2048, 2048
      %60 = vsyncadd [#allocation9], %s59
      %s61 = sshll.u32 [#allocation8], 4
      %s62 = int_to_ptr.vmem [resolvable:$true] %s61
      %67 = dma.hbm_to_vmem [thread:$0]  %s4, 2048, %s62, [#allocation9], 128, 128, 8
    $region21: #{tpu_custom_call.1} parent=1 // pred_fallthru
      _
    // Predicated region
    $region22: #{tpu_custom_call.1} parent=1 // pred_check
      _
    $region23: #{tpu_custom_call.1} parent=1 // pred_check_branch
      %69 = sbr.rel (0) target = $region25
    $region24: #{tpu_custom_call.1} parent=1 // pred_region
      _
    $region25: #{tpu_custom_call.1} parent=1 // pred_fallthru
      _
    // Predicated region
    $region26: #{tpu_custom_call.1} parent=1 // pred_check
      _
    $region27: #{tpu_custom_call.1} parent=1 // pred_check_branch
      %71 = sbr.rel (0) target = $region29
    $region28: #{tpu_custom_call.1} parent=1 // pred_region
      _
    $region29: #{tpu_custom_call.1} parent=1 // pred_fallthru
      _
    // Predicated region
    $region30: #{tpu_custom_call.1} parent=1 // pred_check
      _
    $region31: #{tpu_custom_call.1} parent=1 // pred_check_branch
      %73 = sbr.rel (0) target = $region33
    $region32: #{tpu_custom_call.1} parent=1 // pred_region
      _
    $region33: #{tpu_custom_call.1} parent=1 // pred_fallthru
      _
    // Predicated region
    $region34: #{tpu_custom_call.1} parent=1 // pred_check
      _
    $region35: #{tpu_custom_call.1} parent=1 // pred_check_branch
      %75 = sbr.rel (0) target = $region37
    $region36: #{tpu_custom_call.1} parent=1 // pred_region
      _
    $region37: #{tpu_custom_call.1} parent=1 // pred_fallthru
      _
    // Predicated region
    $region38: #{tpu_custom_call.1} parent=1 // pred_check
      _
    $region39: #{tpu_custom_call.1} parent=1 // pred_check_branch
      %77 = sbr.rel (0) target = $region41
    $region40: #{tpu_custom_call.1} parent=1 // pred_region
      %78 = dma.done [#allocation3], 128
    $region41: #{tpu_custom_call.1} parent=1 // pred_fallthru
      _
    // Predicated region
    $region42: #{tpu_custom_call.1} parent=1 // pred_check
      _
    $region43: #{tpu_custom_call.1} parent=1 // pred_check_branch
      %80 = sbr.rel (0) target = $region45
    $region44: #{tpu_custom_call.1} parent=1 // pred_region
      %81 = dma.done [#allocation6], 2048
    $region45: #{tpu_custom_call.1} parent=1 // pred_fallthru
      _
    // Predicated region
    $region46: #{tpu_custom_call.1} parent=1 // pred_check
      _
    $region47: #{tpu_custom_call.1} parent=1 // pred_check_branch
      %83 = sbr.rel (0) target = $region49
    $region48: #{tpu_custom_call.1} parent=1 // pred_region
      %84 = dma.done [#allocation6], 2048
    $region49: #{tpu_custom_call.1} parent=1 // pred_fallthru
      _
    // Predicated region
    $region50: #{tpu_custom_call.1} parent=1 // pred_check
      _
    $region51: #{tpu_custom_call.1} parent=1 // pred_check_branch
      %86 = sbr.rel (0) target = $region53
    $region52: #{tpu_custom_call.1} parent=1 // pred_region
      %87 = dma.done [#allocation9], 2048
    $region53: #{tpu_custom_call.1} parent=1 // pred_fallthru
      _
    %v88 = vld [vmem:[#allocation2] sm:$0xff]
    %v89 = vld [vmem:[#allocation5] sm:$0xff]
    %v90 = vld [vmem:[#allocation5 + $0x8] sm:$0xff]
    %v91 = vld [vmem:[#allocation5 + $0x10] sm:$0xff]
    %v92 = vld [vmem:[#allocation5 + $0x18] sm:$0xff]
    %v93 = vld [vmem:[#allocation5 + $0x20] sm:$0xff]
    %v94 = vld [vmem:[#allocation5 + $0x28] sm:$0xff]
    %v95 = vld [vmem:[#allocation5 + $0x30] sm:$0xff]
    %v96 = vld [vmem:[#allocation5 + $0x38] sm:$0xff]
    %v97 = vld [vmem:[#allocation5 + $0x40] sm:$0xff]
    %v98 = vld [vmem:[#allocation5 + $0x48] sm:$0xff]
    %v99 = vld [vmem:[#allocation5 + $0x50] sm:$0xff]
    %v100 = vld [vmem:[#allocation5 + $0x58] sm:$0xff]
    %v101 = vld [vmem:[#allocation5 + $0x60] sm:$0xff]
    %v102 = vld [vmem:[#allocation5 + $0x68] sm:$0xff]
    %v103 = vld [vmem:[#allocation5 + $0x70] sm:$0xff]
    %v104 = vld [vmem:[#allocation5 + $0x78] sm:$0xff]
    %105 = vmatprep.subr.mxu0 0.0
    %106 = vmatpush1.msra.mxu0 %v89
    %107 = vmatprep.subr.mxu0 0.0
    %108 = vmatpush1.msra.mxu0 %v90
    %109 = vmatprep.subr.mxu0 0.0
    %110 = vmatpush1.msra.mxu0 %v91
    %111 = vmatprep.subr.mxu0 0.0
    %112 = vmatpush1.msra.mxu0 %v92
    %113 = vmatprep.subr.mxu0 0.0
    %114 = vmatpush1.msra.mxu0 %v93
    %115 = vmatprep.subr.mxu0 0.0
    %116 = vmatpush1.msra.mxu0 %v94
    %117 = vmatprep.subr.mxu0 0.0
    %118 = vmatpush1.msra.mxu0 %v95
    %119 = vmatprep.subr.mxu0 0.0
    %120 = vmatpush1.msra.mxu0 %v96
    %121 = vmatprep.subr.mxu0 0.0
    %122 = vmatpush1.msra.mxu0 %v97
    %123 = vmatprep.subr.mxu0 0.0
    %124 = vmatpush1.msra.mxu0 %v98
    %125 = vmatprep.subr.mxu0 0.0
    %126 = vmatpush1.msra.mxu0 %v99
    %127 = vmatprep.subr.mxu0 0.0
    %128 = vmatpush1.msra.mxu0 %v100
    %129 = vmatprep.subr.mxu0 0.0
    %130 = vmatpush1.msra.mxu0 %v101
    %131 = vmatprep.subr.mxu0 0.0
    %132 = vmatpush1.msra.mxu0 %v102
    %133 = vmatprep.subr.mxu0 0.0
    %134 = vmatpush1.msra.mxu0 %v103
    %135 = vmatprep.subr.mxu0 0.0
    %136 = vmatpush1.msra.mxu0 %v104
    %137 = vmatprep.subr.mxu0 0.0
    %138 = vmatpush1.msra.mxu0 0.0
    %139 = vmatprep.subr.mxu0 0.0
    %140 = vmatpush1.msra.mxu0 0.0
    %141 = vmatprep.subr.mxu0 0.0
    %142 = vmatpush1.msra.mxu0 0.0
    %143 = vmatprep.subr.mxu0 0.0
    %144 = vmatpush1.msra.mxu0 0.0
    %145 = vmatprep.subr.mxu0 0.0
    %146 = vmatpush1.msra.mxu0 0.0
    %147 = vmatprep.subr.mxu0 0.0
    %148 = vmatpush1.msra.mxu0 0.0
    %149 = vmatprep.subr.mxu0 0.0
    %150 = vmatpush1.msra.mxu0 0.0
    %151 = vmatprep.subr.mxu0 0.0
    %152 = vmatpush1.msra.mxu0 0.0
    %153 = vmatprep.subr.mxu0 0.0
    %154 = vmatpush1.msra.mxu0 0.0
    %155 = vmatprep.subr.mxu0 0.0
    %156 = vmatpush1.msra.mxu0 0.0
    %157 = vmatprep.subr.mxu0 0.0
    %158 = vmatpush1.msra.mxu0 0.0
    %159 = vmatprep.subr.mxu0 0.0
    %160 = vmatpush1.msra.mxu0 0.0
    %161 = vmatprep.subr.mxu0 0.0
    %162 = vmatpush1.msra.mxu0 0.0
    %163 = vmatprep.subr.mxu0 0.0
    %164 = vmatpush1.msra.mxu0 0.0
    %165 = vmatprep.subr.mxu0 0.0
    %166 = vmatpush1.msra.mxu0 0.0
    %167 = vmatprep.subr.mxu0 0.0
    %168 = vmatpush1.msra.mxu0 0.0
    %169 = vmatprep.mubr.f32.mxu0 0.0
    %170 = vmatmul.mubr.f32.gmra.mrb[0].mxu0 %v88
    %v171 = vpop.f32.mrb[0].mxu0
    %v172 = vadd.f32 0.0, %v171
    %v173 = vpop.f32.mrb[0].mxu0
    %174 = vdwg.mxu0
    %v175 = vsub.f32 %v88, %v172
    %v176 = vmul.f32 %v175, %v175
    %177 = vmatprep.subr.mxu0 0.0
    %178 = vmatpush1.msra.mxu0 %v89
    %179 = vmatprep.subr.mxu0 0.0
    %180 = vmatpush1.msra.mxu0 %v90
    %181 = vmatprep.subr.mxu0 0.0
    %182 = vmatpush1.msra.mxu0 %v91
    %183 = vmatprep.subr.mxu0 0.0
    %184 = vmatpush1.msra.mxu0 %v92
    %185 = vmatprep.subr.mxu0 0.0
    %186 = vmatpush1.msra.mxu0 %v93
    %187 = vmatprep.subr.mxu0 0.0
    %188 = vmatpush1.msra.mxu0 %v94
    %189 = vmatprep.subr.mxu0 0.0
    %190 = vmatpush1.msra.mxu0 %v95
    %191 = vmatprep.subr.mxu0 0.0
    %192 = vmatpush1.msra.mxu0 %v96
    %193 = vmatprep.subr.mxu0 0.0
    %194 = vmatpush1.msra.mxu0 %v97
    %195 = vmatprep.subr.mxu0 0.0
    %196 = vmatpush1.msra.mxu0 %v98
    %197 = vmatprep.subr.mxu0 0.0
    %198 = vmatpush1.msra.mxu0 %v99
    %199 = vmatprep.subr.mxu0 0.0
    %200 = vmatpush1.msra.mxu0 %v100
    %201 = vmatprep.subr.mxu0 0.0
    %202 = vmatpush1.msra.mxu0 %v101
    %203 = vmatprep.subr.mxu0 0.0
    %204 = vmatpush1.msra.mxu0 %v102
    %205 = vmatprep.subr.mxu0 0.0
    %206 = vmatpush1.msra.mxu0 %v103
    %207 = vmatprep.subr.mxu0 0.0
    %208 = vmatpush1.msra.mxu0 %v104
    %209 = vmatprep.subr.mxu0 0.0
    %210 = vmatpush1.msra.mxu0 0.0
    %211 = vmatprep.subr.mxu0 0.0
    %212 = vmatpush1.msra.mxu0 0.0
    %213 = vmatprep.subr.mxu0 0.0
    %214 = vmatpush1.msra.mxu0 0.0
    %215 = vmatprep.subr.mxu0 0.0
    %216 = vmatpush1.msra.mxu0 0.0
    %217 = vmatprep.subr.mxu0 0.0
    %218 = vmatpush1.msra.mxu0 0.0
    %219 = vmatprep.subr.mxu0 0.0
    %220 = vmatpush1.msra.mxu0 0.0
    %221 = vmatprep.subr.mxu0 0.0
    %222 = vmatpush1.msra.mxu0 0.0
    %223 = vmatprep.subr.mxu0 0.0
    %224 = vmatpush1.msra.mxu0 0.0
    %225 = vmatprep.subr.mxu0 0.0
    %226 = vmatpush1.msra.mxu0 0.0
    %227 = vmatprep.subr.mxu0 0.0
    %228 = vmatpush1.msra.mxu0 0.0
    %229 = vmatprep.subr.mxu0 0.0
    %230 = vmatpush1.msra.mxu0 0.0
    %231 = vmatprep.subr.mxu0 0.0
    %232 = vmatpush1.msra.mxu0 0.0
    %233 = vmatprep.subr.mxu0 0.0
    %234 = vmatpush1.msra.mxu0 0.0
    %235 = vmatprep.subr.mxu0 0.0
    %236 = vmatpush1.msra.mxu0 0.0
    %237 = vmatprep.subr.mxu0 0.0
    %238 = vmatpush1.msra.mxu0 0.0
    %239 = vmatprep.subr.mxu0 0.0
    %240 = vmatpush1.msra.mxu0 0.0
    %241 = vmatprep.mubr.f32.mxu0 0.0
    %242 = vmatmul.mubr.f32.gmra.mrb[0].mxu0 %v176
    %v243 = vpop.f32.mrb[0].mxu0
    %v244 = vadd.f32 1e-05, %v243
    %v245 = vpop.f32.mrb[0].mxu0
    %246 = vdwg.mxu0
    %v247 = vrsqrt.pop %v244
    %v248 = vmul.f32 %v175, %v247
    %v249 = vld [vmem:[#allocation7] sm:$0xff]
    %v250 = vld [vmem:[#allocation7 + $0x8] sm:$0xff]
    %v251 = vld [vmem:[#allocation7 + $0x10] sm:$0xff]
    %v252 = vld [vmem:[#allocation7 + $0x18] sm:$0xff]
    %v253 = vld [vmem:[#allocation7 + $0x20] sm:$0xff]
    %v254 = vld [vmem:[#allocation7 + $0x28] sm:$0xff]
    %v255 = vld [vmem:[#allocation7 + $0x30] sm:$0xff]
    %v256 = vld [vmem:[#allocation7 + $0x38] sm:$0xff]
    %v257 = vld [vmem:[#allocation7 + $0x40] sm:$0xff]
    %v258 = vld [vmem:[#allocation7 + $0x48] sm:$0xff]
    %v259 = vld [vmem:[#allocation7 + $0x50] sm:$0xff]
    %v260 = vld [vmem:[#allocation7 + $0x58] sm:$0xff]
    %v261 = vld [vmem:[#allocation7 + $0x60] sm:$0xff]
    %v262 = vld [vmem:[#allocation7 + $0x68] sm:$0xff]
    %v263 = vld [vmem:[#allocation7 + $0x70] sm:$0xff]
    %v264 = vld [vmem:[#allocation7 + $0x78] sm:$0xff]
    %v265 = vld [vmem:[%s3] sm:$0x1]
    %v267 = vlaneseq
    %v268 = vshrl.u32 %v267, 7
    %v269 = vsub.s32 0, %v268
    %v270 = vrot.slane %v265, %v269
    %272 = vmatprep.subr.mxu0 0.0
    %273 = vmatpush1.msra.mxu0 %v249
    %274 = vmatprep.subr.mxu0 0.0
    %275 = vmatpush1.msra.mxu0 %v250
    %276 = vmatprep.subr.mxu0 0.0
    %277 = vmatpush1.msra.mxu0 %v251
    %278 = vmatprep.subr.mxu0 0.0
    %279 = vmatpush1.msra.mxu0 %v252
    %280 = vmatprep.subr.mxu0 0.0
    %281 = vmatpush1.msra.mxu0 %v253
    %282 = vmatprep.subr.mxu0 0.0
    %283 = vmatpush1.msra.mxu0 %v254
    %284 = vmatprep.subr.mxu0 0.0
    %285 = vmatpush1.msra.mxu0 %v255
    %286 = vmatprep.subr.mxu0 0.0
    %287 = vmatpush1.msra.mxu0 %v256
    %288 = vmatprep.subr.mxu0 0.0
    %289 = vmatpush1.msra.mxu0 %v257
    %290 = vmatprep.subr.mxu0 0.0
    %291 = vmatpush1.msra.mxu0 %v258
    %292 = vmatprep.subr.mxu0 0.0
    %293 = vmatpush1.msra.mxu0 %v259
    %294 = vmatprep.subr.mxu0 0.0
    %295 = vmatpush1.msra.mxu0 %v260
    %296 = vmatprep.subr.mxu0 0.0
    %297 = vmatpush1.msra.mxu0 %v261
    %298 = vmatprep.subr.mxu0 0.0
    %299 = vmatpush1.msra.mxu0 %v262
    %300 = vmatprep.subr.mxu0 0.0
    %301 = vmatpush1.msra.mxu0 %v263
    %302 = vmatprep.subr.mxu0 0.0
    %303 = vmatpush1.msra.mxu0 %v264
    %304 = vmatprep.subr.mxu0 0.0
    %305 = vmatpush1.msra.mxu0 0.0
    %306 = vmatprep.subr.mxu0 0.0
    %307 = vmatpush1.msra.mxu0 0.0
    %308 = vmatprep.subr.mxu0 0.0
    %309 = vmatpush1.msra.mxu0 0.0
    %310 = vmatprep.subr.mxu0 0.0
    %311 = vmatpush1.msra.mxu0 0.0
    %312 = vmatprep.subr.mxu0 0.0
    %313 = vmatpush1.msra.mxu0 0.0
    %314 = vmatprep.subr.mxu0 0.0
    %315 = vmatpush1.msra.mxu0 0.0
    %316 = vmatprep.subr.mxu0 0.0
    %317 = vmatpush1.msra.mxu0 0.0
    %318 = vmatprep.subr.mxu0 0.0
    %319 = vmatpush1.msra.mxu0 0.0
    %320 = vmatprep.subr.mxu0 0.0
    %321 = vmatpush1.msra.mxu0 0.0
    %322 = vmatprep.subr.mxu0 0.0
    %323 = vmatpush1.msra.mxu0 0.0
    %324 = vmatprep.subr.mxu0 0.0
    %325 = vmatpush1.msra.mxu0 0.0
    %326 = vmatprep.subr.mxu0 0.0
    %327 = vmatpush1.msra.mxu0 0.0
    %328 = vmatprep.subr.mxu0 0.0
    %329 = vmatpush1.msra.mxu0 0.0
    %330 = vmatprep.subr.mxu0 0.0
    %331 = vmatpush1.msra.mxu0 0.0
    %332 = vmatprep.subr.mxu0 0.0
    %333 = vmatpush1.msra.mxu0 0.0
    %334 = vmatprep.subr.mxu0 0.0
    %335 = vmatpush1.msra.mxu0 0.0
    %336 = vmatprep.mubr.f32.mxu0 0.0
    %337 = vmatmul.mubr.f32.gmra.mrb[0].mxu0 %v248
    %v338 = vpop.f32.mrb[0].mxu0
    %v339 = vadd.f32 %v270, %v338
    %v340 = vpop.f32.mrb[0].mxu0
    %341 = vdwg.mxu0
    %v342 = vmul.f32 %v339, 0.5
    %v343 = vmul.f32 %v339, 0.70710677
    %v344 = verf.f32.pop %v343
    %v345 = vadd.f32 %v344, 1.0
    %v346 = vmul.f32 %v342, %v345
    %347 = vmatprep.subr.mxu0 0.0
    %348 = vmatpush1.msra.mxu0 %v89
    %349 = vmatprep.subr.mxu0 0.0
    %350 = vmatpush1.msra.mxu0 %v90
    %351 = vmatprep.subr.mxu0 0.0
    %352 = vmatpush1.msra.mxu0 %v91
    %353 = vmatprep.subr.mxu0 0.0
    %354 = vmatpush1.msra.mxu0 %v92
    %355 = vmatprep.subr.mxu0 0.0
    %356 = vmatpush1.msra.mxu0 %v93
    %357 = vmatprep.subr.mxu0 0.0
    %358 = vmatpush1.msra.mxu0 %v94
    %359 = vmatprep.subr.mxu0 0.0
    %360 = vmatpush1.msra.mxu0 %v95
    %361 = vmatprep.subr.mxu0 0.0
    %362 = vmatpush1.msra.mxu0 %v96
    %363 = vmatprep.subr.mxu0 0.0
    %364 = vmatpush1.msra.mxu0 %v97
    %365 = vmatprep.subr.mxu0 0.0
    %366 = vmatpush1.msra.mxu0 %v98
    %367 = vmatprep.subr.mxu0 0.0
    %368 = vmatpush1.msra.mxu0 %v99
    %369 = vmatprep.subr.mxu0 0.0
    %370 = vmatpush1.msra.mxu0 %v100
    %371 = vmatprep.subr.mxu0 0.0
    %372 = vmatpush1.msra.mxu0 %v101
    %373 = vmatprep.subr.mxu0 0.0
    %374 = vmatpush1.msra.mxu0 %v102
    %375 = vmatprep.subr.mxu0 0.0
    %376 = vmatpush1.msra.mxu0 %v103
    %377 = vmatprep.subr.mxu0 0.0
    %378 = vmatpush1.msra.mxu0 %v104
    %379 = vmatprep.subr.mxu0 0.0
    %380 = vmatpush1.msra.mxu0 0.0
    %381 = vmatprep.subr.mxu0 0.0
    %382 = vmatpush1.msra.mxu0 0.0
    %383 = vmatprep.subr.mxu0 0.0
    %384 = vmatpush1.msra.mxu0 0.0
    %385 = vmatprep.subr.mxu0 0.0
    %386 = vmatpush1.msra.mxu0 0.0
    %387 = vmatprep.subr.mxu0 0.0
    %388 = vmatpush1.msra.mxu0 0.0
    %389 = vmatprep.subr.mxu0 0.0
    %390 = vmatpush1.msra.mxu0 0.0
    %391 = vmatprep.subr.mxu0 0.0
    %392 = vmatpush1.msra.mxu0 0.0
    %393 = vmatprep.subr.mxu0 0.0
    %394 = vmatpush1.msra.mxu0 0.0
    %395 = vmatprep.subr.mxu0 0.0
    %396 = vmatpush1.msra.mxu0 0.0
    %397 = vmatprep.subr.mxu0 0.0
    %398 = vmatpush1.msra.mxu0 0.0
    %399 = vmatprep.subr.mxu0 0.0
    %400 = vmatpush1.msra.mxu0 0.0
    %401 = vmatprep.subr.mxu0 0.0
    %402 = vmatpush1.msra.mxu0 0.0
    %403 = vmatprep.subr.mxu0 0.0
    %404 = vmatpush1.msra.mxu0 0.0
    %405 = vmatprep.subr.mxu0 0.0
    %406 = vmatpush1.msra.mxu0 0.0
    %407 = vmatprep.subr.mxu0 0.0
    %408 = vmatpush1.msra.mxu0 0.0
    %409 = vmatprep.subr.mxu0 0.0
    %410 = vmatpush1.msra.mxu0 0.0
    %411 = vmatprep.mubr.f32.mxu0 0.0
    %412 = vmatmul.mubr.f32.gmra.mrb[0].mxu0 %v346
    %v413 = vpop.f32.mrb[0].mxu0
    %v414 = vadd.f32 0.0, %v413
    %v415 = vpop.f32.mrb[0].mxu0
    %416 = vdwg.mxu0
    %v417 = vsub.f32 %v346, %v414
    %v418 = vmul.f32 %v417, %v417
    %419 = vmatprep.subr.mxu0 0.0
    %420 = vmatpush1.msra.mxu0 %v89
    %421 = vmatprep.subr.mxu0 0.0
    %422 = vmatpush1.msra.mxu0 %v90
    %423 = vmatprep.subr.mxu0 0.0
    %424 = vmatpush1.msra.mxu0 %v91
    %425 = vmatprep.subr.mxu0 0.0
    %426 = vmatpush1.msra.mxu0 %v92
    %427 = vmatprep.subr.mxu0 0.0
    %428 = vmatpush1.msra.mxu0 %v93
    %429 = vmatprep.subr.mxu0 0.0
    %430 = vmatpush1.msra.mxu0 %v94
    %431 = vmatprep.subr.mxu0 0.0
    %432 = vmatpush1.msra.mxu0 %v95
    %433 = vmatprep.subr.mxu0 0.0
    %434 = vmatpush1.msra.mxu0 %v96
    %435 = vmatprep.subr.mxu0 0.0
    %436 = vmatpush1.msra.mxu0 %v97
    %437 = vmatprep.subr.mxu0 0.0
    %438 = vmatpush1.msra.mxu0 %v98
    %439 = vmatprep.subr.mxu0 0.0
    %440 = vmatpush1.msra.mxu0 %v99
    %441 = vmatprep.subr.mxu0 0.0
    %442 = vmatpush1.msra.mxu0 %v100
    %443 = vmatprep.subr.mxu0 0.0
    %444 = vmatpush1.msra.mxu0 %v101
    %445 = vmatprep.subr.mxu0 0.0
    %446 = vmatpush1.msra.mxu0 %v102
    %447 = vmatprep.subr.mxu0 0.0
    %448 = vmatpush1.msra.mxu0 %v103
    %449 = vmatprep.subr.mxu0 0.0
    %450 = vmatpush1.msra.mxu0 %v104
    %451 = vmatprep.subr.mxu0 0.0
    %452 = vmatpush1.msra.mxu0 0.0
    %453 = vmatprep.subr.mxu0 0.0
    %454 = vmatpush1.msra.mxu0 0.0
    %455 = vmatprep.subr.mxu0 0.0
    %456 = vmatpush1.msra.mxu0 0.0
    %457 = vmatprep.subr.mxu0 0.0
    %458 = vmatpush1.msra.mxu0 0.0
    %459 = vmatprep.subr.mxu0 0.0
    %460 = vmatpush1.msra.mxu0 0.0
    %461 = vmatprep.subr.mxu0 0.0
    %462 = vmatpush1.msra.mxu0 0.0
    %463 = vmatprep.subr.mxu0 0.0
    %464 = vmatpush1.msra.mxu0 0.0
    %465 = vmatprep.subr.mxu0 0.0
    %466 = vmatpush1.msra.mxu0 0.0
    %467 = vmatprep.subr.mxu0 0.0
    %468 = vmatpush1.msra.mxu0 0.0
    %469 = vmatprep.subr.mxu0 0.0
    %470 = vmatpush1.msra.mxu0 0.0
    %471 = vmatprep.subr.mxu0 0.0
    %472 = vmatpush1.msra.mxu0 0.0
    %473 = vmatprep.subr.mxu0 0.0
    %474 = vmatpush1.msra.mxu0 0.0
    %475 = vmatprep.subr.mxu0 0.0
    %476 = vmatpush1.msra.mxu0 0.0
    %477 = vmatprep.subr.mxu0 0.0
    %478 = vmatpush1.msra.mxu0 0.0
    %479 = vmatprep.subr.mxu0 0.0
    %480 = vmatpush1.msra.mxu0 0.0
    %481 = vmatprep.subr.mxu0 0.0
    %482 = vmatpush1.msra.mxu0 0.0
    %483 = vmatprep.mubr.f32.mxu0 0.0
    %484 = vmatmul.mubr.f32.gmra.mrb[0].mxu0 %v418
    %v485 = vpop.f32.mrb[0].mxu0
    %v486 = vadd.f32 1e-05, %v485
    %v487 = vpop.f32.mrb[0].mxu0
    %488 = vdwg.mxu0
    %v489 = vrsqrt.pop %v486
    %v490 = vmul.f32 %v417, %v489
    %v491 = vld [vmem:[#allocation8] sm:$0xff]
    %v492 = vld [vmem:[#allocation8 + $0x8] sm:$0xff]
    %v493 = vld [vmem:[#allocation8 + $0x10] sm:$0xff]
    %v494 = vld [vmem:[#allocation8 + $0x18] sm:$0xff]
    %v495 = vld [vmem:[#allocation8 + $0x20] sm:$0xff]
    %v496 = vld [vmem:[#allocation8 + $0x28] sm:$0xff]
    %v497 = vld [vmem:[#allocation8 + $0x30] sm:$0xff]
    %v498 = vld [vmem:[#allocation8 + $0x38] sm:$0xff]
    %v499 = vld [vmem:[#allocation8 + $0x40] sm:$0xff]
    %v500 = vld [vmem:[#allocation8 + $0x48] sm:$0xff]
    %v501 = vld [vmem:[#allocation8 + $0x50] sm:$0xff]
    %v502 = vld [vmem:[#allocation8 + $0x58] sm:$0xff]
    %v503 = vld [vmem:[#allocation8 + $0x60] sm:$0xff]
    %v504 = vld [vmem:[#allocation8 + $0x68] sm:$0xff]
    %v505 = vld [vmem:[#allocation8 + $0x70] sm:$0xff]
    %v506 = vld [vmem:[#allocation8 + $0x78] sm:$0xff]
    %v507 = vld [vmem:[%s5] sm:$0x1]
    %v509 = vlaneseq
    %v510 = vshrl.u32 %v509, 7
    %v511 = vsub.s32 0, %v510
    %v512 = vrot.slane %v507, %v511
    %514 = vmatprep.subr.mxu0 0.0
    %515 = vmatpush1.msra.mxu0 %v491
    %516 = vmatprep.subr.mxu0 0.0
    %517 = vmatpush1.msra.mxu0 %v492
    %518 = vmatprep.subr.mxu0 0.0
    %519 = vmatpush1.msra.mxu0 %v493
    %520 = vmatprep.subr.mxu0 0.0
    %521 = vmatpush1.msra.mxu0 %v494
    %522 = vmatprep.subr.mxu0 0.0
    %523 = vmatpush1.msra.mxu0 %v495
    %524 = vmatprep.subr.mxu0 0.0
    %525 = vmatpush1.msra.mxu0 %v496
    %526 = vmatprep.subr.mxu0 0.0
    %527 = vmatpush1.msra.mxu0 %v497
    %528 = vmatprep.subr.mxu0 0.0
    %529 = vmatpush1.msra.mxu0 %v498
    %530 = vmatprep.subr.mxu0 0.0
    %531 = vmatpush1.msra.mxu0 %v499
    %532 = vmatprep.subr.mxu0 0.0
    %533 = vmatpush1.msra.mxu0 %v500
    %534 = vmatprep.subr.mxu0 0.0
    %535 = vmatpush1.msra.mxu0 %v501
    %536 = vmatprep.subr.mxu0 0.0
    %537 = vmatpush1.msra.mxu0 %v502
    %538 = vmatprep.subr.mxu0 0.0
    %539 = vmatpush1.msra.mxu0 %v503
    %540 = vmatprep.subr.mxu0 0.0
    %541 = vmatpush1.msra.mxu0 %v504
    %542 = vmatprep.subr.mxu0 0.0
    %543 = vmatpush1.msra.mxu0 %v505
    %544 = vmatprep.subr.mxu0 0.0
    %545 = vmatpush1.msra.mxu0 %v506
    %546 = vmatprep.subr.mxu0 0.0
    %547 = vmatpush1.msra.mxu0 0.0
    %548 = vmatprep.subr.mxu0 0.0
    %549 = vmatpush1.msra.mxu0 0.0
    %550 = vmatprep.subr.mxu0 0.0
    %551 = vmatpush1.msra.mxu0 0.0
    %552 = vmatprep.subr.mxu0 0.0
    %553 = vmatpush1.msra.mxu0 0.0
    %554 = vmatprep.subr.mxu0 0.0
    %555 = vmatpush1.msra.mxu0 0.0
    %556 = vmatprep.subr.mxu0 0.0
    %557 = vmatpush1.msra.mxu0 0.0
    %558 = vmatprep.subr.mxu0 0.0
    %559 = vmatpush1.msra.mxu0 0.0
    %560 = vmatprep.subr.mxu0 0.0
    %561 = vmatpush1.msra.mxu0 0.0
    %562 = vmatprep.subr.mxu0 0.0
    %563 = vmatpush1.msra.mxu0 0.0
    %564 = vmatprep.subr.mxu0 0.0
    %565 = vmatpush1.msra.mxu0 0.0
    %566 = vmatprep.subr.mxu0 0.0
    %567 = vmatpush1.msra.mxu0 0.0
    %568 = vmatprep.subr.mxu0 0.0
    %569 = vmatpush1.msra.mxu0 0.0
    %570 = vmatprep.subr.mxu0 0.0
    %571 = vmatpush1.msra.mxu0 0.0
    %572 = vmatprep.subr.mxu0 0.0
    %573 = vmatpush1.msra.mxu0 0.0
    %574 = vmatprep.subr.mxu0 0.0
    %575 = vmatpush1.msra.mxu0 0.0
    %576 = vmatprep.subr.mxu0 0.0
    %577 = vmatpush1.msra.mxu0 0.0
    %578 = vmatprep.mubr.f32.mxu0 0.0
    %579 = vmatmul.mubr.f32.gmra.mrb[0].mxu0 %v490
    %v580 = vpop.f32.mrb[0].mxu0
    %v581 = vadd.f32 %v512, %v580
    %v582 = vpop.f32.mrb[0].mxu0
    %583 = vdwg.mxu0
    %v584 = vld [vmem:[%s6] sm:$0x1]
    %v586 = vlaneseq
    %v587 = vshrl.u32 %v586, 7
    %v588 = vsub.s32 0, %v587
    %v589 = vrot.slane %v584, %v588
    %v591 = vmul.f32 %v581, %v589
    %v592 = vtanh.pop %v591
    %v593 = vld [vmem:[%s7] sm:$0x1]
    %v594 = vld [vmem:[%s8] sm:$0x1]
    %v596 = vlaneseq
    %v597 = vshrl.u32 %v596, 7
    %v598 = vsub.s32 0, %v597
    %v599 = vrot.slane %v594, %v598
    %v601 = vmul.f32 %v599, %v592
    %v603 = vlaneseq
    %v604 = vshrl.u32 %v603, 7
    %v605 = vsub.s32 0, %v604
    %v606 = vrot.slane %v593, %v605
    %v608 = vadd.f32 %v606, %v601
    %609 = vst [vmem:[#allocation10] sm:$0xff] %v608
    // Predicated region
    $region54: #{tpu_custom_call.1} parent=1 // pred_check
      _
    $region55: #{tpu_custom_call.1} parent=1 // pred_check_branch
      %611 = sbr.rel (0) target = $region57
    $region56: #{tpu_custom_call.1} parent=1 // pred_region
      %s613 = ssub.s32 128, 32
      %614 = vsyncadd [#allocation4], %s613
      %s615 = sshll.u32 [#allocation10], 4
      %s616 = int_to_ptr.vmem [resolvable:$true] %s615
      %621 = dma.vmem_to_hbm [thread:$0]  %s616, 32, %s9, [#allocation4], 32, 32, 2
    $region57: #{tpu_custom_call.1} parent=1 // pred_fallthru
      _
    // Predicated region
    $region58: #{tpu_custom_call.1} parent=1 // pred_check
      _
    $region59: #{tpu_custom_call.1} parent=1 // pred_check_branch
      %623 = sbr.rel (0) target = $region61
    $region60: #{tpu_custom_call.1} parent=1 // pred_region
      %624 = dma.done [#allocation4], 128
    $region61: #{tpu_custom_call.1} parent=1 // pred_fallthru
      _
    %625 = vsyncpa [#allocation3], 1
    %626 = vsyncpa [#allocation6], 1
    %627 = vsyncpa [#allocation9], 1
    %628 = vsyncpa [#allocation4], 1

</llo_original>
